<compile_context>
chip_gen: v5e
topology: v5e:2x2
jax: 0.10.0
libtpu: 0.0.40
codegen_flags: <defaults>
</compile_context>

<pallas_src>
import jax
import jax.numpy as jnp
from jax import lax
from jax.experimental import pallas as pl
from jax.experimental.pallas import tpu as pltpu

BN_EPS = 1e-5


def _make_dense_block_kernel(num_layers, H, W, use_bf16):
    HW = H * W

    def kernel(x_ref, masks_ref, *rest):
        # x_ref:     (1, C0, HW)      one image, channels on sublanes, HW on lanes
        # masks_ref: (9, HW)          per-tap validity masks (conv zero padding)
        # rest:      per layer (scale (Cin,1), shift (Cin,1),
        #                       wmat (Cout, 9*Cin), bias (Cout,1)), then out_ref
        # out_ref:   (1, C_total, HW)
        out_ref = rest[-1]
        layer_refs = rest[:-1]

        masks = masks_ref[...]                                  # hoisted once
        mask_rows = [masks[t][None, :] for t in range(9)]       # each (1, HW)

        cur = x_ref[0].astype(jnp.float32)                      # (C0, HW)
        for li in range(num_layers):
            scale_ref, shift_ref, wmat_ref, b_ref = layer_refs[4 * li: 4 * li + 4]

            # Eval-mode BatchNorm (folded) + ReLU — pure VPU, f32.
            a = jnp.maximum(cur * scale_ref[...] + shift_ref[...], 0.0)

            # im2col on the lane axis: lane-roll each tap offset and zero the
            # positions that fall into the conv's zero padding.
            pats = []
            for kh in range(3):
                for kw in range(3):
                    dh, dw = kh - 1, kw - 1
                    if dh == 0 and dw == 0:
                        pats.append(a)                          # center tap: no shift
                        continue
                    shift = (-(dh * W + dw)) % HW               # static int
                    rolled = pltpu.roll(a, shift, axis=1)       # XLU rotate
                    pats.append(rolled * mask_rows[kh * 3 + kw])
            patches = jnp.concatenate(pats, axis=0)             # (9*Cin, HW)

            wmat = wmat_ref[...]                                # (Cout, 9*Cin)
            if use_bf16:
                # Optional bf16 MXU operands (v6e/v7x); f32 accumulation kept.
                patches = patches.astype(jnp.bfloat16)
                wmat = wmat.astype(jnp.bfloat16)

            # Single MXU contraction: (Cout, 9*Cin) @ (9*Cin, HW) -> (Cout, HW)
            y = jnp.dot(wmat, patches,
                        preferred_element_type=jnp.float32) + b_ref[...]

            # Dense concat stays in VMEM (no HBM traffic between layers).
            cur = jnp.concatenate([cur, y], axis=0)

        out_ref[...] = cur[None].astype(out_ref.dtype)

    return kernel


def dense_block_forward(x_nchw, params, use_bf16=False):
    """DenseBlock.forward (eval mode): x = cat(x, conv_block(x)), NCHW in/out."""
    N, C0, H, W = x_nchw.shape
    HW = H * W
    x = x_nchw.reshape(N, C0, HW).astype(jnp.float32)

    # Per-tap validity masks for 'same' zero padding, flattened to (9, HW).
    h_idx = jnp.arange(H)[:, None]
    w_idx = jnp.arange(W)[None, :]
    mask_list = []
    for kh in range(3):
        for kw in range(3):
            dh, dw = kh - 1, kw - 1
            valid = ((h_idx + dh >= 0) & (h_idx + dh < H) &
                     (w_idx + dw >= 0) & (w_idx + dw < W))
            mask_list.append(valid.reshape(HW))
    masks = jnp.stack(mask_list).astype(jnp.float32)            # (9, HW)

    layer_args = []
    layer_specs = []
    cin = C0
    flops = 0
    param_bytes = 0
    for p in params:
        cout = p['w'].shape[-1]
        scale_v = p['gamma'] / jnp.sqrt(p['var'] + BN_EPS)
        shift_v = p['beta'] - p['mean'] * scale_v
        # HWIO (kh,kw,c,o) -> (o,kh,kw,c) -> (Cout, 9*Cin); row order matches the
        # im2col row order (tap-major, channel-minor).
        wmat = jnp.transpose(p['w'], (3, 0, 1, 2)).reshape(cout, 9 * cin)
        layer_args += [scale_v.reshape(cin, 1), shift_v.reshape(cin, 1),
                       wmat, p['b'].reshape(cout, 1)]
        layer_specs += [
            pl.BlockSpec((cin, 1), lambda n: (0, 0)),
            pl.BlockSpec((cin, 1), lambda n: (0, 0)),
            pl.BlockSpec((cout, 9 * cin), lambda n: (0, 0)),
            pl.BlockSpec((cout, 1), lambda n: (0, 0)),
        ]
        flops += N * (2 * HW * (9 * cin) * cout + 3 * cin * HW)
        param_bytes += 4 * (2 * cin + 9 * cin * cout + cout)
        cin += cout
    c_total = cin

    kernel = _make_dense_block_kernel(len(params), H, W, use_bf16)

    block_bytes = 4 * (C0 * HW + c_total * HW + 9 * HW) + param_bytes
    vmem_limit = int(min(64 * 1024 * 1024,
                         max(4 * 1024 * 1024, 8 * block_bytes)))
    cost = pl.CostEstimate(
        flops=int(flops),
        transcendentals=0,
        bytes_accessed=int(4 * N * (C0 + c_total) * HW + 4 * 9 * HW + param_bytes),
    )

    # TODO(synk): for large H (e.g. 56x56 DenseNet stages) add a row-band grid
    # axis with a 1-row halo so both v7x TensorCores stay busy at batch<=2 and
    # blocks stay within the 64 MiB v7x VMEM; unnecessary at 16x16.
    out = pl.pallas_call(
        kernel,
        out_shape=jax.ShapeDtypeStruct((N, c_total, HW), jnp.float32),
        grid_spec=pltpu.PrefetchScalarGridSpec(
            num_scalar_prefetch=0,
            grid=(N,),
            in_specs=[
                pl.BlockSpec((1, C0, HW), lambda n: (n, 0, 0)),
                pl.BlockSpec((9, HW), lambda n: (0, 0)),
            ] + layer_specs,
            out_specs=pl.BlockSpec((1, c_total, HW), lambda n: (n, 0, 0)),
        ),
        compiler_params=pltpu.CompilerParams(
            dimension_semantics=("parallel",),
            vmem_limit_bytes=vmem_limit,
        ),
        cost_estimate=cost,
    )(x, masks, *layer_args)

    return out.reshape(N, c_total, H, W)


def init_dense_block_params(key, num_convs, in_channels, out_channels):
    params = []
    for i in range(num_convs):
        in_c = in_channels + i * out_channels
        key, k1, k2, k3, k4, k5, k6 = jax.random.split(key, 7)
        bound = 1.0 / (in_c * 9) ** 0.5
        params.append(dict(
            gamma=jax.random.uniform(k1, (in_c,), jnp.float32, 0.5, 1.5),
            beta=0.1 * jax.random.normal(k2, (in_c,), jnp.float32),
            mean=0.1 * jax.random.normal(k3, (in_c,), jnp.float32),
            var=jax.random.uniform(k4, (in_c,), jnp.float32, 0.5, 1.5),
            # stored as HWIO: (3, 3, in_c, out_channels)
            w=jax.random.uniform(k5, (3, 3, in_c, out_channels),
                                 jnp.float32, -bound, bound),
            b=jax.random.uniform(k6, (out_channels,), jnp.float32,
                                 -bound, bound),
        ))
    return params


def dense_block_reference(x_nchw, params):
    """Pure-JAX NCHW reference (mirrors the PyTorch eval-mode forward)."""
    x = x_nchw.astype(jnp.float32)
    for p in params:
        scale = p['gamma'] / jnp.sqrt(p['var'] + BN_EPS)
        shift = p['beta'] - p['mean'] * scale
        a = jnp.maximum(x * scale[None, :, None, None]
                        + shift[None, :, None, None], 0.0)
        w_oihw = jnp.transpose(p['w'], (3, 2, 0, 1))
        y = lax.conv_general_dilated(
            a, w_oihw, window_strides=(1, 1), padding='SAME',
            dimension_numbers=('NCHW', 'OIHW', 'NCHW'))
        y = y + p['b'][None, :, None, None]
        x = jnp.concatenate([x, y], axis=1)
    return x


if __name__ == "__main__":
    num_convs, in_channels, out_channels = 2, 4, 8
    N, H, W = 2, 16, 16

    key = jax.random.PRNGKey(0)
    kx, kp = jax.random.split(key)
    x = jax.random.normal(kx, (N, in_channels, H, W), jnp.float32)
    params = init_dense_block_params(kp, num_convs, in_channels, out_channels)

    fwd = jax.jit(dense_block_forward)
    out = jax.block_until_ready(fwd(x, params))
    ref = jax.block_until_ready(dense_block_reference(x, params))

    expected_c = in_channels + num_convs * out_channels
    assert out.shape == (N, expected_c, H, W), out.shape
    assert jnp.allclose(out, ref, rtol=1e-4, atol=1e-4), \
        float(jnp.max(jnp.abs(out - ref)))
    print("KERNEL_OK")
</pallas_src>

<mosaic_0001>
module attributes {stable_mosaic.version = 11 : i64} {
  func.func @kernel(%arg0: i32, %arg1: memref<1x4x256xf32, #tpu.memory_space<vmem>>, %arg2: memref<9x256xf32, #tpu.memory_space<vmem>>, %arg3: memref<4x1xf32, #tpu.memory_space<vmem>>, %arg4: memref<4x1xf32, #tpu.memory_space<vmem>>, %arg5: memref<8x36xf32, #tpu.memory_space<vmem>>, %arg6: memref<8x1xf32, #tpu.memory_space<vmem>>, %arg7: memref<12x1xf32, #tpu.memory_space<vmem>>, %arg8: memref<12x1xf32, #tpu.memory_space<vmem>>, %arg9: memref<8x108xf32, #tpu.memory_space<vmem>>, %arg10: memref<8x1xf32, #tpu.memory_space<vmem>>, %arg11: memref<1x20x256xf32, #tpu.memory_space<vmem>>) attributes {dimension_semantics = [#tpu.dimension_semantics<parallel>], iteration_bounds = array<i64: 2>, scalar_prefetch = 0 : i64, scratch_operands = 0 : i64, tpu.core_type = #tpu.core_type<tc>, window_params = [{transform_indices = @transform_0, window_bounds = array<i64: 1, 4, 256>}, {pipeline_mode = #tpu.pipeline_mode<synchronous>, transform_indices = @transform_1, window_bounds = array<i64: 9, 256>}, {pipeline_mode = #tpu.pipeline_mode<synchronous>, transform_indices = @transform_2, window_bounds = array<i64: 4, 1>}, {pipeline_mode = #tpu.pipeline_mode<synchronous>, transform_indices = @transform_3, window_bounds = array<i64: 4, 1>}, {pipeline_mode = #tpu.pipeline_mode<synchronous>, transform_indices = @transform_4, window_bounds = array<i64: 8, 36>}, {pipeline_mode = #tpu.pipeline_mode<synchronous>, transform_indices = @transform_5, window_bounds = array<i64: 8, 1>}, {pipeline_mode = #tpu.pipeline_mode<synchronous>, transform_indices = @transform_6, window_bounds = array<i64: 12, 1>}, {pipeline_mode = #tpu.pipeline_mode<synchronous>, transform_indices = @transform_7, window_bounds = array<i64: 12, 1>}, {pipeline_mode = #tpu.pipeline_mode<synchronous>, transform_indices = @transform_8, window_bounds = array<i64: 8, 108>}, {pipeline_mode = #tpu.pipeline_mode<synchronous>, transform_indices = @transform_9, window_bounds = array<i64: 8, 1>}, {transform_indices = @transform_10, window_bounds = array<i64: 1, 20, 256>}]} {
    %c0 = arith.constant 0 : index
    %c0_0 = arith.constant 0 : index
    %0 = vector.load %arg2[%c0, %c0_0] : memref<9x256xf32, #tpu.memory_space<vmem>>, vector<9x256xf32>
    %1 = vector.extract_strided_slice %0 {offsets = [0, 0], sizes = [1, 256], strides = [1, 1]} : vector<9x256xf32> to vector<1x256xf32>
    %2 = vector.shape_cast %1 : vector<1x256xf32> to vector<256xf32>
    %3 = vector.shape_cast %2 : vector<256xf32> to vector<1x256xf32>
    %4 = vector.extract_strided_slice %0 {offsets = [1, 0], sizes = [1, 256], strides = [1, 1]} : vector<9x256xf32> to vector<1x256xf32>
    %5 = vector.shape_cast %4 : vector<1x256xf32> to vector<256xf32>
    %6 = vector.shape_cast %5 : vector<256xf32> to vector<1x256xf32>
    %7 = vector.extract_strided_slice %0 {offsets = [2, 0], sizes = [1, 256], strides = [1, 1]} : vector<9x256xf32> to vector<1x256xf32>
    %8 = vector.shape_cast %7 : vector<1x256xf32> to vector<256xf32>
    %9 = vector.shape_cast %8 : vector<256xf32> to vector<1x256xf32>
    %10 = vector.extract_strided_slice %0 {offsets = [3, 0], sizes = [1, 256], strides = [1, 1]} : vector<9x256xf32> to vector<1x256xf32>
    %11 = vector.shape_cast %10 : vector<1x256xf32> to vector<256xf32>
    %12 = vector.shape_cast %11 : vector<256xf32> to vector<1x256xf32>
    %13 = vector.extract_strided_slice %0 {offsets = [5, 0], sizes = [1, 256], strides = [1, 1]} : vector<9x256xf32> to vector<1x256xf32>
    %14 = vector.shape_cast %13 : vector<1x256xf32> to vector<256xf32>
    %15 = vector.shape_cast %14 : vector<256xf32> to vector<1x256xf32>
    %16 = vector.extract_strided_slice %0 {offsets = [6, 0], sizes = [1, 256], strides = [1, 1]} : vector<9x256xf32> to vector<1x256xf32>
    %17 = vector.shape_cast %16 : vector<1x256xf32> to vector<256xf32>
    %18 = vector.shape_cast %17 : vector<256xf32> to vector<1x256xf32>
    %19 = vector.extract_strided_slice %0 {offsets = [7, 0], sizes = [1, 256], strides = [1, 1]} : vector<9x256xf32> to vector<1x256xf32>
    %20 = vector.shape_cast %19 : vector<1x256xf32> to vector<256xf32>
    %21 = vector.shape_cast %20 : vector<256xf32> to vector<1x256xf32>
    %22 = vector.extract_strided_slice %0 {offsets = [8, 0], sizes = [1, 256], strides = [1, 1]} : vector<9x256xf32> to vector<1x256xf32>
    %23 = vector.shape_cast %22 : vector<1x256xf32> to vector<256xf32>
    %24 = vector.shape_cast %23 : vector<256xf32> to vector<1x256xf32>
    %c0_1 = arith.constant 0 : index
    %c0_2 = arith.constant 0 : index
    %c0_3 = arith.constant 0 : index
    %25 = vector.load %arg1[%c0_1, %c0_2, %c0_3] : memref<1x4x256xf32, #tpu.memory_space<vmem>>, vector<1x4x256xf32>
    %26 = vector.shape_cast %25 : vector<1x4x256xf32> to vector<4x256xf32>
    %c0_4 = arith.constant 0 : index
    %c0_5 = arith.constant 0 : index
    %27 = vector.load %arg3[%c0_4, %c0_5] : memref<4x1xf32, #tpu.memory_space<vmem>>, vector<4x1xf32>
    %28 = vector.broadcast %27 : vector<4x1xf32> to vector<4x256xf32>
    %29 = arith.mulf %26, %28 : vector<4x256xf32>
    %c0_6 = arith.constant 0 : index
    %c0_7 = arith.constant 0 : index
    %30 = vector.load %arg4[%c0_6, %c0_7] : memref<4x1xf32, #tpu.memory_space<vmem>>, vector<4x1xf32>
    %31 = vector.broadcast %30 : vector<4x1xf32> to vector<4x256xf32>
    %32 = arith.addf %29, %31 : vector<4x256xf32>
    %cst = arith.constant 0.000000e+00 : f32
    %33 = vector.broadcast %cst : f32 to vector<4x256xf32>
    %34 = arith.maximumf %32, %33 : vector<4x256xf32>
    %c17_i32 = arith.constant 17 : i32
    %35 = tpu.dynamic_rotate %34 by %c17_i32 dim 1 : vector<4x256xf32>, i32 -> vector<4x256xf32>
    %36 = vector.broadcast %3 : vector<1x256xf32> to vector<4x256xf32>
    %37 = arith.mulf %35, %36 : vector<4x256xf32>
    %c16_i32 = arith.constant 16 : i32
    %38 = tpu.dynamic_rotate %34 by %c16_i32 dim 1 : vector<4x256xf32>, i32 -> vector<4x256xf32>
    %39 = vector.broadcast %6 : vector<1x256xf32> to vector<4x256xf32>
    %40 = arith.mulf %38, %39 : vector<4x256xf32>
    %c15_i32 = arith.constant 15 : i32
    %41 = tpu.dynamic_rotate %34 by %c15_i32 dim 1 : vector<4x256xf32>, i32 -> vector<4x256xf32>
    %42 = vector.broadcast %9 : vector<1x256xf32> to vector<4x256xf32>
    %43 = arith.mulf %41, %42 : vector<4x256xf32>
    %c1_i32 = arith.constant 1 : i32
    %44 = tpu.dynamic_rotate %34 by %c1_i32 dim 1 : vector<4x256xf32>, i32 -> vector<4x256xf32>
    %45 = vector.broadcast %12 : vector<1x256xf32> to vector<4x256xf32>
    %46 = arith.mulf %44, %45 : vector<4x256xf32>
    %c255_i32 = arith.constant 255 : i32
    %47 = tpu.dynamic_rotate %34 by %c255_i32 dim 1 : vector<4x256xf32>, i32 -> vector<4x256xf32>
    %48 = vector.broadcast %15 : vector<1x256xf32> to vector<4x256xf32>
    %49 = arith.mulf %47, %48 : vector<4x256xf32>
    %c241_i32 = arith.constant 241 : i32
    %50 = tpu.dynamic_rotate %34 by %c241_i32 dim 1 : vector<4x256xf32>, i32 -> vector<4x256xf32>
    %51 = vector.broadcast %18 : vector<1x256xf32> to vector<4x256xf32>
    %52 = arith.mulf %50, %51 : vector<4x256xf32>
    %c240_i32 = arith.constant 240 : i32
    %53 = tpu.dynamic_rotate %34 by %c240_i32 dim 1 : vector<4x256xf32>, i32 -> vector<4x256xf32>
    %54 = vector.broadcast %21 : vector<1x256xf32> to vector<4x256xf32>
    %55 = arith.mulf %53, %54 : vector<4x256xf32>
    %c239_i32 = arith.constant 239 : i32
    %56 = tpu.dynamic_rotate %34 by %c239_i32 dim 1 : vector<4x256xf32>, i32 -> vector<4x256xf32>
    %57 = vector.broadcast %24 : vector<1x256xf32> to vector<4x256xf32>
    %58 = arith.mulf %56, %57 : vector<4x256xf32>
    %59 = tpu.concatenate %37, %40, %43, %46, %34, %49, %52, %55, %58 in 0 : vector<4x256xf32>, vector<4x256xf32>, vector<4x256xf32>, vector<4x256xf32>, vector<4x256xf32>, vector<4x256xf32>, vector<4x256xf32>, vector<4x256xf32>, vector<4x256xf32> -> vector<36x256xf32>
    %c0_8 = arith.constant 0 : index
    %c0_9 = arith.constant 0 : index
    %60 = vector.load %arg5[%c0_8, %c0_9] : memref<8x36xf32, #tpu.memory_space<vmem>>, vector<8x36xf32>
    %cst_10 = arith.constant dense<0.000000e+00> : vector<8x256xf32>
    %61 = tpu.matmul %60, %59, %cst_10 {dimension_numbers = #tpu.dot_dimension_numbers<[1], [0], [0], [1], [0, 0, 1, 1], [], []>} : vector<8x36xf32>, vector<36x256xf32>, vector<8x256xf32> -> vector<8x256xf32>
    %c0_11 = arith.constant 0 : index
    %c0_12 = arith.constant 0 : index
    %62 = vector.load %arg6[%c0_11, %c0_12] : memref<8x1xf32, #tpu.memory_space<vmem>>, vector<8x1xf32>
    %63 = vector.broadcast %62 : vector<8x1xf32> to vector<8x256xf32>
    %64 = arith.addf %61, %63 : vector<8x256xf32>
    %65 = tpu.concatenate %26, %64 in 0 : vector<4x256xf32>, vector<8x256xf32> -> vector<12x256xf32>
    %c0_13 = arith.constant 0 : index
    %c0_14 = arith.constant 0 : index
    %66 = vector.load %arg7[%c0_13, %c0_14] : memref<12x1xf32, #tpu.memory_space<vmem>>, vector<12x1xf32>
    %67 = vector.broadcast %66 : vector<12x1xf32> to vector<12x256xf32>
    %68 = arith.mulf %65, %67 : vector<12x256xf32>
    %c0_15 = arith.constant 0 : index
    %c0_16 = arith.constant 0 : index
    %69 = vector.load %arg8[%c0_15, %c0_16] : memref<12x1xf32, #tpu.memory_space<vmem>>, vector<12x1xf32>
    %70 = vector.broadcast %69 : vector<12x1xf32> to vector<12x256xf32>
    %71 = arith.addf %68, %70 : vector<12x256xf32>
    %cst_17 = arith.constant 0.000000e+00 : f32
    %72 = vector.broadcast %cst_17 : f32 to vector<12x256xf32>
    %73 = arith.maximumf %71, %72 : vector<12x256xf32>
    %c17_i32_18 = arith.constant 17 : i32
    %74 = tpu.dynamic_rotate %73 by %c17_i32_18 dim 1 : vector<12x256xf32>, i32 -> vector<12x256xf32>
    %75 = vector.broadcast %3 : vector<1x256xf32> to vector<12x256xf32>
    %76 = arith.mulf %74, %75 : vector<12x256xf32>
    %c16_i32_19 = arith.constant 16 : i32
    %77 = tpu.dynamic_rotate %73 by %c16_i32_19 dim 1 : vector<12x256xf32>, i32 -> vector<12x256xf32>
    %78 = vector.broadcast %6 : vector<1x256xf32> to vector<12x256xf32>
    %79 = arith.mulf %77, %78 : vector<12x256xf32>
    %c15_i32_20 = arith.constant 15 : i32
    %80 = tpu.dynamic_rotate %73 by %c15_i32_20 dim 1 : vector<12x256xf32>, i32 -> vector<12x256xf32>
    %81 = vector.broadcast %9 : vector<1x256xf32> to vector<12x256xf32>
    %82 = arith.mulf %80, %81 : vector<12x256xf32>
    %c1_i32_21 = arith.constant 1 : i32
    %83 = tpu.dynamic_rotate %73 by %c1_i32_21 dim 1 : vector<12x256xf32>, i32 -> vector<12x256xf32>
    %84 = vector.broadcast %12 : vector<1x256xf32> to vector<12x256xf32>
    %85 = arith.mulf %83, %84 : vector<12x256xf32>
    %c255_i32_22 = arith.constant 255 : i32
    %86 = tpu.dynamic_rotate %73 by %c255_i32_22 dim 1 : vector<12x256xf32>, i32 -> vector<12x256xf32>
    %87 = vector.broadcast %15 : vector<1x256xf32> to vector<12x256xf32>
    %88 = arith.mulf %86, %87 : vector<12x256xf32>
    %c241_i32_23 = arith.constant 241 : i32
    %89 = tpu.dynamic_rotate %73 by %c241_i32_23 dim 1 : vector<12x256xf32>, i32 -> vector<12x256xf32>
    %90 = vector.broadcast %18 : vector<1x256xf32> to vector<12x256xf32>
    %91 = arith.mulf %89, %90 : vector<12x256xf32>
    %c240_i32_24 = arith.constant 240 : i32
    %92 = tpu.dynamic_rotate %73 by %c240_i32_24 dim 1 : vector<12x256xf32>, i32 -> vector<12x256xf32>
    %93 = vector.broadcast %21 : vector<1x256xf32> to vector<12x256xf32>
    %94 = arith.mulf %92, %93 : vector<12x256xf32>
    %c239_i32_25 = arith.constant 239 : i32
    %95 = tpu.dynamic_rotate %73 by %c239_i32_25 dim 1 : vector<12x256xf32>, i32 -> vector<12x256xf32>
    %96 = vector.broadcast %24 : vector<1x256xf32> to vector<12x256xf32>
    %97 = arith.mulf %95, %96 : vector<12x256xf32>
    %98 = tpu.concatenate %76, %79, %82, %85, %73, %88, %91, %94, %97 in 0 : vector<12x256xf32>, vector<12x256xf32>, vector<12x256xf32>, vector<12x256xf32>, vector<12x256xf32>, vector<12x256xf32>, vector<12x256xf32>, vector<12x256xf32>, vector<12x256xf32> -> vector<108x256xf32>
    %c0_26 = arith.constant 0 : index
    %c0_27 = arith.constant 0 : index
    %99 = vector.load %arg9[%c0_26, %c0_27] : memref<8x108xf32, #tpu.memory_space<vmem>>, vector<8x108xf32>
    %cst_28 = arith.constant dense<0.000000e+00> : vector<8x256xf32>
    %100 = tpu.matmul %99, %98, %cst_28 {dimension_numbers = #tpu.dot_dimension_numbers<[1], [0], [0], [1], [0, 0, 1, 1], [], []>} : vector<8x108xf32>, vector<108x256xf32>, vector<8x256xf32> -> vector<8x256xf32>
    %c0_29 = arith.constant 0 : index
    %c0_30 = arith.constant 0 : index
    %101 = vector.load %arg10[%c0_29, %c0_30] : memref<8x1xf32, #tpu.memory_space<vmem>>, vector<8x1xf32>
    %102 = vector.broadcast %101 : vector<8x1xf32> to vector<8x256xf32>
    %103 = arith.addf %100, %102 : vector<8x256xf32>
    %104 = tpu.concatenate %65, %103 in 0 : vector<12x256xf32>, vector<8x256xf32> -> vector<20x256xf32>
    %105 = vector.shape_cast %104 : vector<20x256xf32> to vector<1x20x256xf32>
    %c0_31 = arith.constant 0 : index
    %c0_32 = arith.constant 0 : index
    %c0_33 = arith.constant 0 : index
    %106 = vector.load %arg11[%c0_31, %c0_32, %c0_33] : memref<1x20x256xf32, #tpu.memory_space<vmem>>, vector<1x20x256xf32>
    tpu.vector_store %arg11[%c0_31, %c0_32, %c0_33], %105 {strides = array<i32>} : memref<1x20x256xf32, #tpu.memory_space<vmem>>, vector<1x20x256xf32>,
    return
  }
  func.func @transform_0(%arg0: i32) -> (i32, i32, i32) {
    %c0_i32 = arith.constant 0 : i32
    %c0_i32_0 = arith.constant 0 : i32
    %c0_i32_1 = arith.constant 0 : i32
    return %arg0, %c0_i32, %c0_i32_0 : i32, i32, i32
  }
  func.func @transform_1(%arg0: i32) -> (i32, i32) {
    %c0_i32 = arith.constant 0 : i32
    %c0_i32_0 = arith.constant 0 : i32
    %c0_i32_1 = arith.constant 0 : i32
    return %c0_i32, %c0_i32_0 : i32, i32
  }
  func.func @transform_2(%arg0: i32) -> (i32, i32) {
    %c0_i32 = arith.constant 0 : i32
    %c0_i32_0 = arith.constant 0 : i32
    %c0_i32_1 = arith.constant 0 : i32
    return %c0_i32, %c0_i32_0 : i32, i32
  }
  func.func @transform_3(%arg0: i32) -> (i32, i32) {
    %c0_i32 = arith.constant 0 : i32
    %c0_i32_0 = arith.constant 0 : i32
    %c0_i32_1 = arith.constant 0 : i32
    return %c0_i32, %c0_i32_0 : i32, i32
  }
  func.func @transform_4(%arg0: i32) -> (i32, i32) {
    %c0_i32 = arith.constant 0 : i32
    %c0_i32_0 = arith.constant 0 : i32
    %c0_i32_1 = arith.constant 0 : i32
    return %c0_i32, %c0_i32_0 : i32, i32
  }
  func.func @transform_5(%arg0: i32) -> (i32, i32) {
    %c0_i32 = arith.constant 0 : i32
    %c0_i32_0 = arith.constant 0 : i32
    %c0_i32_1 = arith.constant 0 : i32
    return %c0_i32, %c0_i32_0 : i32, i32
  }
  func.func @transform_6(%arg0: i32) -> (i32, i32) {
    %c0_i32 = arith.constant 0 : i32
    %c0_i32_0 = arith.constant 0 : i32
    %c0_i32_1 = arith.constant 0 : i32
    return %c0_i32, %c0_i32_0 : i32, i32
  }
  func.func @transform_7(%arg0: i32) -> (i32, i32) {
    %c0_i32 = arith.constant 0 : i32
    %c0_i32_0 = arith.constant 0 : i32
    %c0_i32_1 = arith.constant 0 : i32
    return %c0_i32, %c0_i32_0 : i32, i32
  }
  func.func @transform_8(%arg0: i32) -> (i32, i32) {
    %c0_i32 = arith.constant 0 : i32
    %c0_i32_0 = arith.constant 0 : i32
    %c0_i32_1 = arith.constant 0 : i32
    return %c0_i32, %c0_i32_0 : i32, i32
  }
  func.func @transform_9(%arg0: i32) -> (i32, i32) {
    %c0_i32 = arith.constant 0 : i32
    %c0_i32_0 = arith.constant 0 : i32
    %c0_i32_1 = arith.constant 0 : i32
    return %c0_i32, %c0_i32_0 : i32, i32
  }
  func.func @transform_10(%arg0: i32) -> (i32, i32, i32) {
    %c0_i32 = arith.constant 0 : i32
    %c0_i32_0 = arith.constant 0 : i32
    %c0_i32_1 = arith.constant 0 : i32
    return %arg0, %c0_i32, %c0_i32_0 : i32, i32, i32
  }
}

</mosaic_0001>

<llo_original>
// kernel: dense_block_forward.1
$region0: #{dense_block_forward.1}
  #allocation0 [shape = 'u32[]', space=smem, size = 0x4, offset = 0x4, fixed_abs, tag = 'smem constant byte address 0x4 - core index']
  #allocation1 [shape = 'u32[72,128]{1,0:T(1,128)}', space=vmem, size = 0x9000, scoped, tag = 'internal scratch']
  %s0 = inlined_call_operand.vmem [shape: f32[2,4,256], index: 0, kind: input, shape index: {}]
  %s1 = inlined_call_operand.vmem [shape: f32[9,256], index: 1, kind: input, shape index: {}]
  %s2 = inlined_call_operand.vmem [shape: f32[4,1], index: 2, kind: input, shape index: {}]
  %s3 = inlined_call_operand.vmem [shape: f32[4,1], index: 3, kind: input, shape index: {}]
  %s4 = inlined_call_operand.vmem [shape: f32[8,36], index: 4, kind: input, shape index: {}]
  %s5 = inlined_call_operand.vmem [shape: f32[8,1], index: 5, kind: input, shape index: {}]
  %s6 = inlined_call_operand.vmem [shape: f32[12,1], index: 6, kind: input, shape index: {}]
  %s7 = inlined_call_operand.vmem [shape: f32[12,1], index: 7, kind: input, shape index: {}]
  %s8 = inlined_call_operand.vmem [shape: f32[8,108], index: 8, kind: input, shape index: {}]
  %s9 = inlined_call_operand.vmem [shape: f32[8,1], index: 9, kind: input, shape index: {}]
  %s10 = inlined_call_operand.vmem [shape: f32[2,20,256], index: 10, kind: output, shape index: {}]
  %s11 = sld [smem:[#allocation0]]
  $region73: #{dense_block_forward.1} parent=0
    _
  %s13 = ssub.s32 1, %s11
  %s14 = scalar_select 0, %s13, %s11
  loop: start=0, step=1, limit=4
  $region2: #{dense_block_forward.1} parent=0 // loop_pre_header
    _
  $region3: #{dense_block_forward.1} parent=0 // loop_header
    %s16 = sphi 0, %s20
    %p17 = scmp.ge.s32.totalorder %s16, 4
    %s26 = sphi 0, %s28
    %s29 = sphi 0, %s26
    %s30 = sphi 0, %s29
    %s46 = sphi 0, %s30
    %s50 = sphi 0, %s50
    %s52 = sphi 0, %s50
    %s53 = sphi 0, %s52
    %s67 = sphi 0, %s53
    %s71 = sphi 0, %s71
    %s73 = sphi 0, %s71
    %s74 = sphi 0, %s73
    %s88 = sphi 0, %s74
    %s92 = sphi 0, %s92
    %s94 = sphi 0, %s92
    %s95 = sphi 0, %s94
    %s109 = sphi 0, %s95
    %s113 = sphi 0, %s113
    %s115 = sphi 0, %s113
    %s116 = sphi 0, %s115
    %s130 = sphi 0, %s116
    %s134 = sphi 0, %s134
    %s136 = sphi 0, %s134
    %s137 = sphi 0, %s136
    %s151 = sphi 0, %s137
    %s155 = sphi 0, %s155
    %s157 = sphi 0, %s155
    %s158 = sphi 0, %s157
    %s172 = sphi 0, %s158
    %s176 = sphi 0, %s176
    %s178 = sphi 0, %s176
    %s179 = sphi 0, %s178
    %s193 = sphi 0, %s179
    %s197 = sphi 0, %s197
    %s199 = sphi 0, %s197
    %s200 = sphi 0, %s199
    %s214 = sphi 0, %s200
    %s218 = sphi 0, %s218
    %s220 = sphi 0, %s218
    %s221 = sphi 0, %s220
    %s235 = sphi 0, %s221
    %s241 = sphi 0, %s243
    %s244 = sphi 0, %s241
    %s245 = sphi 0, %s244
    %s261 = sphi 0, %s245
  $region4: #{dense_block_forward.1} parent=0 // loop_header_branch
    %19 = sbr.rel (%p17) target = $region8
  $region5: #{dense_block_forward.1} parent=0 // loop_body
    %s21 = ssub.s32 %s16, 1
    %s22 = ssub.s32 %s16, 2
    %s23 = sadd.s32 %s16, 1
    %s24 = ssub.s32 %s16, %s23
    %p25 = scmp.eq.s32.totalorder %s24, 0
    %s27 = sadd.s32 %s26, 1
    %s28 = scalar_select %p25, %s26, %s27
    %p31 = pneg %p25
    %p32 = scmp.eq.s32.totalorder %s16, 1
    %p33 = por %p31, %p32
    %p34 = scmp.ne.s32.totalorder %s26, %s29
    %p35 = scmp.eq.s32.totalorder %s16, 0
    %p36 = por %p34, %p35
    %p37 = scmp.ne.s32.totalorder %s26, %s29
    %p38 = scmp.eq.s32.totalorder %s21, 1
    %p39 = por %p37, %p38
    %p40 = scmp.ne.s32.totalorder %s29, %s30
    %p41 = scmp.eq.s32.totalorder %s21, 0
    %p42 = por %p40, %p41
    %p43 = scmp.ne.s32.totalorder %s29, %s30
    %p44 = scmp.eq.s32.totalorder %s22, 1
    %p45 = por %p43, %p44
    %p47 = scmp.ne.s32.totalorder %s30, %s46
    %p48 = scmp.eq.s32.totalorder %s22, 0
    %p49 = por %p47, %p48
    %s51 = sadd.s32 %s50, 1
    %p54 = scmp.eq.s32.totalorder %s16, 1
    %p55 = scmp.ne.s32.totalorder %s50, %s52
    %p56 = scmp.eq.s32.totalorder %s16, 0
    %p57 = por %p55, %p56
    %p58 = scmp.ne.s32.totalorder %s50, %s52
    %p59 = scmp.eq.s32.totalorder %s21, 1
    %p60 = por %p58, %p59
    %p61 = scmp.ne.s32.totalorder %s52, %s53
    %p62 = scmp.eq.s32.totalorder %s21, 0
    %p63 = por %p61, %p62
    %p64 = scmp.ne.s32.totalorder %s52, %s53
    %p65 = scmp.eq.s32.totalorder %s22, 1
    %p66 = por %p64, %p65
    %p68 = scmp.ne.s32.totalorder %s53, %s67
    %p69 = scmp.eq.s32.totalorder %s22, 0
    %p70 = por %p68, %p69
    %s72 = sadd.s32 %s71, 1
    %p75 = scmp.eq.s32.totalorder %s16, 1
    %p76 = scmp.ne.s32.totalorder %s71, %s73
    %p77 = scmp.eq.s32.totalorder %s16, 0
    %p78 = por %p76, %p77
    %p79 = scmp.ne.s32.totalorder %s71, %s73
    %p80 = scmp.eq.s32.totalorder %s21, 1
    %p81 = por %p79, %p80
    %p82 = scmp.ne.s32.totalorder %s73, %s74
    %p83 = scmp.eq.s32.totalorder %s21, 0
    %p84 = por %p82, %p83
    %p85 = scmp.ne.s32.totalorder %s73, %s74
    %p86 = scmp.eq.s32.totalorder %s22, 1
    %p87 = por %p85, %p86
    %p89 = scmp.ne.s32.totalorder %s74, %s88
    %p90 = scmp.eq.s32.totalorder %s22, 0
    %p91 = por %p89, %p90
    %s93 = sadd.s32 %s92, 1
    %p96 = scmp.eq.s32.totalorder %s16, 1
    %p97 = scmp.ne.s32.totalorder %s92, %s94
    %p98 = scmp.eq.s32.totalorder %s16, 0
    %p99 = por %p97, %p98
    %p100 = scmp.ne.s32.totalorder %s92, %s94
    %p101 = scmp.eq.s32.totalorder %s21, 1
    %p102 = por %p100, %p101
    %p103 = scmp.ne.s32.totalorder %s94, %s95
    %p104 = scmp.eq.s32.totalorder %s21, 0
    %p105 = por %p103, %p104
    %p106 = scmp.ne.s32.totalorder %s94, %s95
    %p107 = scmp.eq.s32.totalorder %s22, 1
    %p108 = por %p106, %p107
    %p110 = scmp.ne.s32.totalorder %s95, %s109
    %p111 = scmp.eq.s32.totalorder %s22, 0
    %p112 = por %p110, %p111
    %s114 = sadd.s32 %s113, 1
    %p117 = scmp.eq.s32.totalorder %s16, 1
    %p118 = scmp.ne.s32.totalorder %s113, %s115
    %p119 = scmp.eq.s32.totalorder %s16, 0
    %p120 = por %p118, %p119
    %p121 = scmp.ne.s32.totalorder %s113, %s115
    %p122 = scmp.eq.s32.totalorder %s21, 1
    %p123 = por %p121, %p122
    %p124 = scmp.ne.s32.totalorder %s115, %s116
    %p125 = scmp.eq.s32.totalorder %s21, 0
    %p126 = por %p124, %p125
    %p127 = scmp.ne.s32.totalorder %s115, %s116
    %p128 = scmp.eq.s32.totalorder %s22, 1
    %p129 = por %p127, %p128
    %p131 = scmp.ne.s32.totalorder %s116, %s130
    %p132 = scmp.eq.s32.totalorder %s22, 0
    %p133 = por %p131, %p132
    %s135 = sadd.s32 %s134, 1
    %p138 = scmp.eq.s32.totalorder %s16, 1
    %p139 = scmp.ne.s32.totalorder %s134, %s136
    %p140 = scmp.eq.s32.totalorder %s16, 0
    %p141 = por %p139, %p140
    %p142 = scmp.ne.s32.totalorder %s134, %s136
    %p143 = scmp.eq.s32.totalorder %s21, 1
    %p144 = por %p142, %p143
    %p145 = scmp.ne.s32.totalorder %s136, %s137
    %p146 = scmp.eq.s32.totalorder %s21, 0
    %p147 = por %p145, %p146
    %p148 = scmp.ne.s32.totalorder %s136, %s137
    %p149 = scmp.eq.s32.totalorder %s22, 1
    %p150 = por %p148, %p149
    %p152 = scmp.ne.s32.totalorder %s137, %s151
    %p153 = scmp.eq.s32.totalorder %s22, 0
    %p154 = por %p152, %p153
    %s156 = sadd.s32 %s155, 1
    %p159 = scmp.eq.s32.totalorder %s16, 1
    %p160 = scmp.ne.s32.totalorder %s155, %s157
    %p161 = scmp.eq.s32.totalorder %s16, 0
    %p162 = por %p160, %p161
    %p163 = scmp.ne.s32.totalorder %s155, %s157
    %p164 = scmp.eq.s32.totalorder %s21, 1
    %p165 = por %p163, %p164
    %p166 = scmp.ne.s32.totalorder %s157, %s158
    %p167 = scmp.eq.s32.totalorder %s21, 0
    %p168 = por %p166, %p167
    %p169 = scmp.ne.s32.totalorder %s157, %s158
    %p170 = scmp.eq.s32.totalorder %s22, 1
    %p171 = por %p169, %p170
    %p173 = scmp.ne.s32.totalorder %s158, %s172
    %p174 = scmp.eq.s32.totalorder %s22, 0
    %p175 = por %p173, %p174
    %s177 = sadd.s32 %s176, 1
    %p180 = scmp.eq.s32.totalorder %s16, 1
    %p181 = scmp.ne.s32.totalorder %s176, %s178
    %p182 = scmp.eq.s32.totalorder %s16, 0
    %p183 = por %p181, %p182
    %p184 = scmp.ne.s32.totalorder %s176, %s178
    %p185 = scmp.eq.s32.totalorder %s21, 1
    %p186 = por %p184, %p185
    %p187 = scmp.ne.s32.totalorder %s178, %s179
    %p188 = scmp.eq.s32.totalorder %s21, 0
    %p189 = por %p187, %p188
    %p190 = scmp.ne.s32.totalorder %s178, %s179
    %p191 = scmp.eq.s32.totalorder %s22, 1
    %p192 = por %p190, %p191
    %p194 = scmp.ne.s32.totalorder %s179, %s193
    %p195 = scmp.eq.s32.totalorder %s22, 0
    %p196 = por %p194, %p195
    %s198 = sadd.s32 %s197, 1
    %p201 = scmp.eq.s32.totalorder %s16, 1
    %p202 = scmp.ne.s32.totalorder %s197, %s199
    %p203 = scmp.eq.s32.totalorder %s16, 0
    %p204 = por %p202, %p203
    %p205 = scmp.ne.s32.totalorder %s197, %s199
    %p206 = scmp.eq.s32.totalorder %s21, 1
    %p207 = por %p205, %p206
    %p208 = scmp.ne.s32.totalorder %s199, %s200
    %p209 = scmp.eq.s32.totalorder %s21, 0
    %p210 = por %p208, %p209
    %p211 = scmp.ne.s32.totalorder %s199, %s200
    %p212 = scmp.eq.s32.totalorder %s22, 1
    %p213 = por %p211, %p212
    %p215 = scmp.ne.s32.totalorder %s200, %s214
    %p216 = scmp.eq.s32.totalorder %s22, 0
    %p217 = por %p215, %p216
    %s219 = sadd.s32 %s218, 1
    %p222 = scmp.eq.s32.totalorder %s16, 1
    %p223 = scmp.ne.s32.totalorder %s218, %s220
    %p224 = scmp.eq.s32.totalorder %s16, 0
    %p225 = por %p223, %p224
    %p226 = scmp.ne.s32.totalorder %s218, %s220
    %p227 = scmp.eq.s32.totalorder %s21, 1
    %p228 = por %p226, %p227
    %p229 = scmp.ne.s32.totalorder %s220, %s221
    %p230 = scmp.eq.s32.totalorder %s21, 0
    %p231 = por %p229, %p230
    %p232 = scmp.ne.s32.totalorder %s220, %s221
    %p233 = scmp.eq.s32.totalorder %s22, 1
    %p234 = por %p232, %p233
    %p236 = scmp.ne.s32.totalorder %s221, %s235
    %p237 = scmp.eq.s32.totalorder %s22, 0
    %p238 = por %p236, %p237
    %s239 = ssub.s32 %s16, %s23
    %p240 = scmp.eq.s32.totalorder %s239, 0
    %s242 = sadd.s32 %s241, 1
    %s243 = scalar_select %p240, %s241, %s242
    %p246 = pneg %p240
    %p247 = scmp.eq.s32.totalorder %s16, 1
    %p248 = por %p246, %p247
    %p249 = scmp.ne.s32.totalorder %s241, %s244
    %p250 = scmp.eq.s32.totalorder %s16, 0
    %p251 = por %p249, %p250
    %p252 = scmp.ne.s32.totalorder %s241, %s244
    %p253 = scmp.eq.s32.totalorder %s21, 1
    %p254 = por %p252, %p253
    %p255 = scmp.ne.s32.totalorder %s244, %s245
    %p256 = scmp.eq.s32.totalorder %s21, 0
    %p257 = por %p255, %p256
    %p258 = scmp.ne.s32.totalorder %s244, %s245
    %p259 = scmp.eq.s32.totalorder %s22, 1
    %p260 = por %p258, %p259
    %p262 = scmp.ne.s32.totalorder %s245, %s261
    %p263 = scmp.eq.s32.totalorder %s22, 0
    %p264 = por %p262, %p263
    %p265 = scmp.le.s32.totalorder 1, %s16
    %p266 = scmp.lt.s32.totalorder %s16, 3
    %p267 = pnand %p265, %p266
    %p268 = pneg %p267
    // Predicated region
    $region9: #{dense_block_forward.1} parent=5 // pred_check
      _
    $region10: #{dense_block_forward.1} parent=5 // pred_check_branch
      %270 = sbr.rel (%p267) target = $region12
    $region11: #{dense_block_forward.1} parent=5 // pred_region
      %s271 = ssub.s32 %s16, 1
      // Predicated region
      $region13: #{dense_block_forward.1} parent=11 // pred_check
        %p272 = pneg %p63
      $region14: #{dense_block_forward.1} parent=11 // pred_check_branch
        %274 = sbr.rel (%p272) target = $region16
      $region15: #{dense_block_forward.1} parent=11 // pred_region
        _
      $region16: #{dense_block_forward.1} parent=11 // pred_fallthru
        _
      // Predicated region
      $region17: #{dense_block_forward.1} parent=11 // pred_check
        %p275 = pneg %p84
      $region18: #{dense_block_forward.1} parent=11 // pred_check_branch
        %277 = sbr.rel (%p275) target = $region20
      $region19: #{dense_block_forward.1} parent=11 // pred_region
        _
      $region20: #{dense_block_forward.1} parent=11 // pred_fallthru
        _
      // Predicated region
      $region21: #{dense_block_forward.1} parent=11 // pred_check
        %p278 = pneg %p105
      $region22: #{dense_block_forward.1} parent=11 // pred_check_branch
        %280 = sbr.rel (%p278) target = $region24
      $region23: #{dense_block_forward.1} parent=11 // pred_region
        _
      $region24: #{dense_block_forward.1} parent=11 // pred_fallthru
        _
      // Predicated region
      $region25: #{dense_block_forward.1} parent=11 // pred_check
        %p281 = pneg %p126
      $region26: #{dense_block_forward.1} parent=11 // pred_check_branch
        %283 = sbr.rel (%p281) target = $region28
      $region27: #{dense_block_forward.1} parent=11 // pred_region
        _
      $region28: #{dense_block_forward.1} parent=11 // pred_fallthru
        _
      // Predicated region
      $region29: #{dense_block_forward.1} parent=11 // pred_check
        %p284 = pneg %p147
      $region30: #{dense_block_forward.1} parent=11 // pred_check_branch
        %286 = sbr.rel (%p284) target = $region32
      $region31: #{dense_block_forward.1} parent=11 // pred_region
        _
      $region32: #{dense_block_forward.1} parent=11 // pred_fallthru
        _
      // Predicated region
      $region33: #{dense_block_forward.1} parent=11 // pred_check
        %p287 = pneg %p168
      $region34: #{dense_block_forward.1} parent=11 // pred_check_branch
        %289 = sbr.rel (%p287) target = $region36
      $region35: #{dense_block_forward.1} parent=11 // pred_region
        _
      $region36: #{dense_block_forward.1} parent=11 // pred_fallthru
        _
      // Predicated region
      $region37: #{dense_block_forward.1} parent=11 // pred_check
        %p290 = pneg %p189
      $region38: #{dense_block_forward.1} parent=11 // pred_check_branch
        %292 = sbr.rel (%p290) target = $region40
      $region39: #{dense_block_forward.1} parent=11 // pred_region
        _
      $region40: #{dense_block_forward.1} parent=11 // pred_fallthru
        _
      // Predicated region
      $region41: #{dense_block_forward.1} parent=11 // pred_check
        %p293 = pneg %p210
      $region42: #{dense_block_forward.1} parent=11 // pred_check_branch
        %295 = sbr.rel (%p293) target = $region44
      $region43: #{dense_block_forward.1} parent=11 // pred_region
        _
      $region44: #{dense_block_forward.1} parent=11 // pred_fallthru
        _
      // Predicated region
      $region45: #{dense_block_forward.1} parent=11 // pred_check
        %p296 = pneg %p231
      $region46: #{dense_block_forward.1} parent=11 // pred_check_branch
        %298 = sbr.rel (%p296) target = $region48
      $region47: #{dense_block_forward.1} parent=11 // pred_region
        _
      $region48: #{dense_block_forward.1} parent=11 // pred_fallthru
        _
    $region12: #{dense_block_forward.1} parent=5 // pred_fallthru
      _
    %p299 = scmp.lt.s32.totalorder %s16, 2
    // Predicated region
    $region49: #{dense_block_forward.1} parent=5 // pred_check
      %p300 = pneg %p299
    $region50: #{dense_block_forward.1} parent=5 // pred_check_branch
      %302 = sbr.rel (%p300) target = $region52
    $region51: #{dense_block_forward.1} parent=5 // pred_region
      // Predicated region
      $region53: #{dense_block_forward.1} parent=51 // pred_check
        %p303 = pneg %p36
      $region54: #{dense_block_forward.1} parent=51 // pred_check_branch
        %305 = sbr.rel (%p303) target = $region56
      $region55: #{dense_block_forward.1} parent=51 // pred_region
        %p306 = scmp.lt.s32.totalorder %s16, 1
        %s307 = scalar_select %p306, %s16, 1
        %s308 = smul.addr %s307, 2
        %s309 = smul.addr %s308, 4
        %s310 = scalar_lea.vmem %s0, %s309
      $region56: #{dense_block_forward.1} parent=51 // pred_fallthru
        _
    $region52: #{dense_block_forward.1} parent=5 // pred_fallthru
      _
    %p311 = scmp.le.s32.totalorder 1, %s16
    %p312 = scmp.lt.s32.totalorder %s16, 3
    %p313 = pnand %p311, %p312
    %p314 = pneg %p313
    // Predicated region
    $region57: #{dense_block_forward.1} parent=5 // pred_check
      _
    $region58: #{dense_block_forward.1} parent=5 // pred_check_branch
      %316 = sbr.rel (%p313) target = $region60
    $region59: #{dense_block_forward.1} parent=5 // pred_region
      %s317 = ssub.s32 %s16, 1
      %p318 = scmp.lt.s32.totalorder %s21, 1
      %s319 = scalar_select %p318, %s21, 1
      %s320 = smul.addr %s319, 2
      %s321 = smul.addr %s320, 4
      %s322 = scalar_lea.vmem %s0, %s321
      %p323 = pneg %p42
      %p324 = pneg %p39
      %p325 = pneg %p63
      %p326 = pneg %p60
      %p327 = pneg %p84
      %p328 = pneg %p81
      %p329 = pneg %p105
      %p330 = pneg %p102
      %p331 = pneg %p126
      %p332 = pneg %p123
      %p333 = pneg %p147
      %p334 = pneg %p144
      %p335 = pneg %p168
      %p336 = pneg %p165
      %p337 = pneg %p189
      %p338 = pneg %p186
      %p339 = pneg %p210
      %p340 = pneg %p207
      %p341 = pneg %p231
      %p342 = pneg %p228
      %p343 = pneg %p257
      %p344 = pneg %p254
      %p345 = scmp.lt.s32.totalorder %s21, 1
      %s346 = scalar_select %p345, %s21, 1
      %s347 = smul.addr %s346, 6
      %s348 = smul.addr %s347, 8
      %s349 = scalar_lea.vmem %s10, %s348
      %p350 = scmp.lt.s32.totalorder %s21, 1
      %s351 = scalar_select %p350, %s21, 1
      %s352 = smul.addr %s351, 2
      %s353 = smul.addr %s352, 4
      %s354 = scalar_lea.vmem %s0, %s353
      %p355 = scmp.lt.s32.totalorder %s21, 1
      %s356 = scalar_select %p355, %s21, 1
      %s357 = smul.addr %s356, 6
      %s358 = smul.addr %s357, 8
      %s359 = scalar_lea.vmem %s10, %s358
      %v360 = vld [vmem:[%s1] sm:$0xff]
      %v361 = vld [vmem:[%s1 + $0x8] sm:$0xff]
      %v362 = vld [vmem:[%s1 + $0x10] sm:$0x1]
      %v363 = vld [vmem:[%s1 + $0x18] sm:$0x1]
      %v364 = vld [vmem:[%s354] sm:$0xff]
      %v365 = vld [vmem:[%s2] sm:$0xf]
      %367 = vset.pattern.permute.xlu0 0
      %368 = vperm.xlu0 %367, %v365
      %v369 = vpop.permute.xlu0 %368
      %v371 = vunpack.c.l.s4 839922192
      %v372 = vunpack.c.0.s8 %v371
      %v373 = vperm.slane %v369, %v372
      %v375 = vmul.f32 %v364, %v373
      %v376 = vld [vmem:[%s3] sm:$0xf]
      %378 = vset.pattern.permute.xlu0 0
      %379 = vperm.xlu0 %378, %v376
      %v380 = vpop.permute.xlu0 %379
      %v382 = vunpack.c.l.s4 839922192
      %v383 = vunpack.c.0.s8 %v382
      %v384 = vperm.slane %v380, %v383
      %v386 = vadd.f32 %v375, %v384
      %v387 = vmax.f32 %v386, 0.0
      %389 = vst [vmem:[#allocation1] ss:$2 sm:$0xff] %v387
      %v390 = vld.sshfl [vmem:[#allocation1] sm:$0xff pattern:$0x75316420]
      %v391 = vld.sshfl [vmem:[#allocation1 + $0x8] sm:$0xff pattern:$0x75316420]
      %394 = vrot.lane.b32.xlu0 %v390, 17
      %v395 = vpop.permute.xlu0 %394
      %396 = vrot.lane.b32.xlu0 %v391, 17
      %v397 = vpop.permute.xlu0 %396
      %v398 = vlaneseq
      %v399 = vand.u32 %v398, 127
      %vm400 = vcmp.lt.s32.totalorder %v399, 17
      %v401 = vsel %vm400, %v395, %v397
      %v402 = vsel %vm400, %v397, %v395
      %v403 = vperm.slane %v360, 0
      %v404 = vperm.slane %v361, 0
      %v405 = vmul.f32 %v402, %v403
      %v406 = vmul.f32 %v401, %v404
      %407 = vst [vmem:[#allocation1] ss:$2 sm:$0xff] %v387
      %v408 = vld.sshfl [vmem:[#allocation1] sm:$0xff pattern:$0x75316420]
      %v409 = vld.sshfl [vmem:[#allocation1 + $0x8] sm:$0xff pattern:$0x75316420]
      %412 = vrot.lane.b32.xlu0 %v408, 16
      %v413 = vpop.permute.xlu0 %412
      %414 = vrot.lane.b32.xlu0 %v409, 16
      %v415 = vpop.permute.xlu0 %414
      %vm416 = vcmp.lt.s32.totalorder %v399, 16
      %v417 = vsel %vm416, %v413, %v415
      %v418 = vsel %vm416, %v415, %v413
      %v419 = vperm.slane %v360, 1
      %v420 = vperm.slane %v361, 1
      %v421 = vmul.f32 %v418, %v419
      %v422 = vmul.f32 %v417, %v420
      %423 = vst [vmem:[#allocation1] ss:$2 sm:$0xff] %v387
      %v424 = vld.sshfl [vmem:[#allocation1] sm:$0xff pattern:$0x75316420]
      %v425 = vld.sshfl [vmem:[#allocation1 + $0x8] sm:$0xff pattern:$0x75316420]
      %428 = vrot.lane.b32.xlu0 %v424, 15
      %v429 = vpop.permute.xlu0 %428
      %430 = vrot.lane.b32.xlu0 %v425, 15
      %v431 = vpop.permute.xlu0 %430
      %vm432 = vcmp.lt.s32.totalorder %v399, 15
      %v433 = vsel %vm432, %v429, %v431
      %v434 = vsel %vm432, %v431, %v429
      %v435 = vperm.slane %v360, 2
      %v436 = vperm.slane %v361, 2
      %v437 = vmul.f32 %v434, %v435
      %v438 = vmul.f32 %v433, %v436
      %439 = vst [vmem:[#allocation1] ss:$2 sm:$0xff] %v387
      %v440 = vld.sshfl [vmem:[#allocation1] sm:$0xff pattern:$0x75316420]
      %v441 = vld.sshfl [vmem:[#allocation1 + $0x8] sm:$0xff pattern:$0x75316420]
      %444 = vrot.lane.b32.xlu0 %v440, 1
      %v445 = vpop.permute.xlu0 %444
      %446 = vrot.lane.b32.xlu0 %v441, 1
      %v447 = vpop.permute.xlu0 %446
      %vm448 = vcmp.lt.s32.totalorder %v399, 1
      %v449 = vsel %vm448, %v445, %v447
      %v450 = vsel %vm448, %v447, %v445
      %v451 = vperm.slane %v360, 3
      %v452 = vperm.slane %v361, 3
      %v453 = vmul.f32 %v450, %v451
      %v454 = vmul.f32 %v449, %v452
      %455 = vst [vmem:[#allocation1] ss:$2 sm:$0xff] %v387
      %v456 = vld.sshfl [vmem:[#allocation1] sm:$0xff pattern:$0x75316420]
      %v457 = vld.sshfl [vmem:[#allocation1 + $0x8] sm:$0xff pattern:$0x75316420]
      %460 = vrot.lane.b32.xlu0 %v456, 127
      %v461 = vpop.permute.xlu0 %460
      %462 = vrot.lane.b32.xlu0 %v457, 127
      %v463 = vpop.permute.xlu0 %462
      %vm464 = vcmp.lt.s32.totalorder %v399, 127
      %v465 = vsel %vm464, %v461, %v463
      %v466 = vsel %vm464, %v463, %v461
      %v467 = vperm.slane %v360, 5
      %v468 = vperm.slane %v361, 5
      %v469 = vmul.f32 %v465, %v467
      %v470 = vmul.f32 %v466, %v468
      %471 = vst [vmem:[#allocation1] ss:$2 sm:$0xff] %v387
      %v472 = vld.sshfl [vmem:[#allocation1] sm:$0xff pattern:$0x75316420]
      %v473 = vld.sshfl [vmem:[#allocation1 + $0x8] sm:$0xff pattern:$0x75316420]
      %476 = vrot.lane.b32.xlu0 %v472, 113
      %v477 = vpop.permute.xlu0 %476
      %478 = vrot.lane.b32.xlu0 %v473, 113
      %v479 = vpop.permute.xlu0 %478
      %vm480 = vcmp.lt.s32.totalorder %v399, 113
      %v481 = vsel %vm480, %v477, %v479
      %v482 = vsel %vm480, %v479, %v477
      %v483 = vperm.slane %v360, 6
      %v484 = vperm.slane %v361, 6
      %v485 = vmul.f32 %v481, %v483
      %v486 = vmul.f32 %v482, %v484
      %487 = vst [vmem:[#allocation1] ss:$2 sm:$0xff] %v387
      %v488 = vld.sshfl [vmem:[#allocation1] sm:$0xff pattern:$0x75316420]
      %v489 = vld.sshfl [vmem:[#allocation1 + $0x8] sm:$0xff pattern:$0x75316420]
      %492 = vrot.lane.b32.xlu0 %v488, 112
      %v493 = vpop.permute.xlu0 %492
      %494 = vrot.lane.b32.xlu0 %v489, 112
      %v495 = vpop.permute.xlu0 %494
      %vm496 = vcmp.lt.s32.totalorder %v399, 112
      %v497 = vsel %vm496, %v493, %v495
      %v498 = vsel %vm496, %v495, %v493
      %v499 = vperm.slane %v360, 7
      %v500 = vperm.slane %v361, 7
      %v501 = vmul.f32 %v497, %v499
      %v502 = vmul.f32 %v498, %v500
      %503 = vst [vmem:[#allocation1] ss:$2 sm:$0xff] %v387
      %v504 = vld.sshfl [vmem:[#allocation1] sm:$0xff pattern:$0x75316420]
      %v505 = vld.sshfl [vmem:[#allocation1 + $0x8] sm:$0xff pattern:$0x75316420]
      %508 = vrot.lane.b32.xlu0 %v504, 111
      %v509 = vpop.permute.xlu0 %508
      %510 = vrot.lane.b32.xlu0 %v505, 111
      %v511 = vpop.permute.xlu0 %510
      %vm512 = vcmp.lt.s32.totalorder %v399, 111
      %v513 = vsel %vm512, %v509, %v511
      %v514 = vsel %vm512, %v511, %v509
      %v515 = vperm.slane %v362, 0
      %v516 = vperm.slane %v363, 0
      %v517 = vmul.f32 %v513, %v515
      %v518 = vmul.f32 %v514, %v516
      %v521 = vrot.slane %v421, 4
      %v522 = vrot.slane %v422, 4
      %v527 = vrot.slane %v453, 4
      %v528 = vrot.slane %v454, 4
      %531 = vst [vmem:[#allocation1] ss:$2 sm:$0xff] %v387
      %v532 = vld.sshfl [vmem:[#allocation1] sm:$0xff pattern:$0x75316420]
      %v533 = vld.sshfl [vmem:[#allocation1 + $0x8] sm:$0xff pattern:$0x75316420]
      %v538 = vrot.slane %v469, 4
      %v539 = vrot.slane %v470, 4
      %v544 = vrot.slane %v501, 4
      %v545 = vrot.slane %v502, 4
      %vm548 = vcmask 1043456
      %v549 = vsel %vm548, %v405, %v521
      %v550 = vsel %vm548, %v406, %v522
      %v551 = vsel %vm548, %v437, %v527
      %v552 = vsel %vm548, %v438, %v528
      %v553 = vsel %vm548, %v532, %v538
      %v554 = vsel %vm548, %v533, %v539
      %v555 = vsel %vm548, %v485, %v544
      %v556 = vsel %vm548, %v486, %v545
      %v557 = vld [vmem:[%s4] sm:$0xff]
      %v558 = vld [vmem:[%s5] sm:$0xff]
      %560 = vset.pattern.permute.xlu0 0
      %561 = vperm.xlu0 %560, %v558
      %v562 = vpop.permute.xlu0 %561
      %vm564 = vcmask 293888
      %v566 = vsel %vm564, %v557, 0
      %v569 = vsel %vm548, %v517, 0
      %v572 = vsel %vm548, %v518, 0
      %574 = vmatpush.msra.mxu0 0.0
      %575 = vmatpush.msra.mxu0 0.0
      %576 = vmatpush.msra.mxu0 0.0
      %577 = vmatpush.msra.mxu0 0.0
      %578 = vmatpush.msra.mxu0 0.0
      %579 = vmatpush.msra.mxu0 0.0
      %580 = vmatpush.msra.mxu0 0.0
      %581 = vmatpush.msra.mxu0 0.0
      %582 = vmatpush.msra.mxu0 0.0
      %583 = vmatpush.msra.mxu0 0.0
      %584 = vmatpush.msra.mxu0 0.0
      %585 = vmatpush.msra.mxu0 %v569
      %586 = vmatpush.msra.mxu0 %v555
      %587 = vmatpush.msra.mxu0 %v553
      %588 = vmatpush.msra.mxu0 %v551
      %589 = vmatpush.msra.mxu0 %v549
      %590 = vmatmul.f32.gmra.mxu0 %v566
      %v591 = vpop.f32.mrf.mxu0
      %v592 = vadd.f32 %v562, %v591
      %593 = vdwg.mxu0
      %594 = vmatpush.msra.mxu0 0.0
      %595 = vmatpush.msra.mxu0 0.0
      %596 = vmatpush.msra.mxu0 0.0
      %597 = vmatpush.msra.mxu0 0.0
      %598 = vmatpush.msra.mxu0 0.0
      %599 = vmatpush.msra.mxu0 0.0
      %600 = vmatpush.msra.mxu0 0.0
      %601 = vmatpush.msra.mxu0 0.0
      %602 = vmatpush.msra.mxu0 0.0
      %603 = vmatpush.msra.mxu0 0.0
      %604 = vmatpush.msra.mxu0 0.0
      %605 = vmatpush.msra.mxu0 %v572
      %606 = vmatpush.msra.mxu0 %v556
      %607 = vmatpush.msra.mxu0 %v554
      %608 = vmatpush.msra.mxu0 %v552
      %609 = vmatpush.msra.mxu0 %v550
      %610 = vmatmul.f32.gmra.mxu0 %v566
      %v611 = vpop.f32.mrf.mxu0
      %v612 = vadd.f32 %v562, %v611
      %613 = vdwg.mxu0
      %615 = vst [vmem:[#allocation1] ss:$2 sm:$0xff] %v364
      %v616 = vld.sshfl [vmem:[#allocation1] sm:$0xff pattern:$0x75316420]
      %v617 = vld.sshfl [vmem:[#allocation1 + $0x8] sm:$0xff pattern:$0x75316420]
      %v622 = vrot.slane %v592, 4
      %v623 = vrot.slane %v612, 4
      %v626 = vsel %vm548, %v616, %v622
      %v627 = vsel %vm548, %v617, %v623
      %v628 = vld [vmem:[%s6] sm:$0xff]
      %v629 = vld [vmem:[%s6 + $0x8] sm:$0xf]
      %631 = vset.pattern.permute.xlu0 0
      %632 = vperm.xlu0 %631, %v628
      %v633 = vpop.permute.xlu0 %632
      %636 = vset.pattern.permute.xlu0 0
      %637 = vperm.xlu0 %636, %v629
      %v638 = vpop.permute.xlu0 %637
      %v640 = vmul.f32 %v626, %v633
      %v641 = vmul.f32 %v627, %v633
      %v642 = vmul.f32 %v622, %v638
      %v643 = vmul.f32 %v623, %v638
      %v644 = vld [vmem:[%s7] sm:$0xff]
      %v645 = vld [vmem:[%s7 + $0x8] sm:$0xf]
      %647 = vset.pattern.permute.xlu0 0
      %648 = vperm.xlu0 %647, %v644
      %v649 = vpop.permute.xlu0 %648
      %652 = vset.pattern.permute.xlu0 0
      %653 = vperm.xlu0 %652, %v645
      %v654 = vpop.permute.xlu0 %653
      %v656 = vadd.f32 %v640, %v649
      %v657 = vadd.f32 %v641, %v649
      %v658 = vadd.f32 %v642, %v654
      %v659 = vadd.f32 %v643, %v654
      %v660 = vmax.f32 %v656, 0.0
      %v661 = vmax.f32 %v657, 0.0
      %v662 = vmax.f32 %v658, 0.0
      %v663 = vmax.f32 %v659, 0.0
      %664 = vrot.lane.b32.xlu0 %v660, 17
      %v665 = vpop.permute.xlu0 %664
      %666 = vrot.lane.b32.xlu0 %v662, 17
      %v667 = vpop.permute.xlu0 %666
      %668 = vrot.lane.b32.xlu0 %v661, 17
      %v669 = vpop.permute.xlu0 %668
      %670 = vrot.lane.b32.xlu0 %v663, 17
      %v671 = vpop.permute.xlu0 %670
      %v672 = vsel %vm400, %v665, %v669
      %v673 = vsel %vm400, %v667, %v671
      %v674 = vsel %vm400, %v669, %v665
      %v675 = vsel %vm400, %v671, %v667
      %v676 = vmul.f32 %v674, %v403
      %v677 = vmul.f32 %v672, %v404
      %v678 = vmul.f32 %v675, %v403
      %v679 = vmul.f32 %v673, %v404
      %680 = vrot.lane.b32.xlu0 %v660, 16
      %v681 = vpop.permute.xlu0 %680
      %682 = vrot.lane.b32.xlu0 %v662, 16
      %v683 = vpop.permute.xlu0 %682
      %684 = vrot.lane.b32.xlu0 %v661, 16
      %v685 = vpop.permute.xlu0 %684
      %686 = vrot.lane.b32.xlu0 %v663, 16
      %v687 = vpop.permute.xlu0 %686
      %v688 = vsel %vm416, %v681, %v685
      %v689 = vsel %vm416, %v683, %v687
      %v690 = vsel %vm416, %v685, %v681
      %v691 = vsel %vm416, %v687, %v683
      %v692 = vmul.f32 %v690, %v419
      %v693 = vmul.f32 %v688, %v420
      %v694 = vmul.f32 %v691, %v419
      %v695 = vmul.f32 %v689, %v420
      %696 = vrot.lane.b32.xlu0 %v660, 15
      %v697 = vpop.permute.xlu0 %696
      %698 = vrot.lane.b32.xlu0 %v662, 15
      %v699 = vpop.permute.xlu0 %698
      %700 = vrot.lane.b32.xlu0 %v661, 15
      %v701 = vpop.permute.xlu0 %700
      %702 = vrot.lane.b32.xlu0 %v663, 15
      %v703 = vpop.permute.xlu0 %702
      %v704 = vsel %vm432, %v697, %v701
      %v705 = vsel %vm432, %v699, %v703
      %v706 = vsel %vm432, %v701, %v697
      %v707 = vsel %vm432, %v703, %v699
      %v708 = vmul.f32 %v706, %v435
      %v709 = vmul.f32 %v704, %v436
      %v710 = vmul.f32 %v707, %v435
      %v711 = vmul.f32 %v705, %v436
      %712 = vrot.lane.b32.xlu0 %v660, 1
      %v713 = vpop.permute.xlu0 %712
      %714 = vrot.lane.b32.xlu0 %v662, 1
      %v715 = vpop.permute.xlu0 %714
      %716 = vrot.lane.b32.xlu0 %v661, 1
      %v717 = vpop.permute.xlu0 %716
      %718 = vrot.lane.b32.xlu0 %v663, 1
      %v719 = vpop.permute.xlu0 %718
      %v720 = vsel %vm448, %v713, %v717
      %v721 = vsel %vm448, %v715, %v719
      %v722 = vsel %vm448, %v717, %v713
      %v723 = vsel %vm448, %v719, %v715
      %v724 = vmul.f32 %v722, %v451
      %v725 = vmul.f32 %v720, %v452
      %v726 = vmul.f32 %v723, %v451
      %v727 = vmul.f32 %v721, %v452
      %728 = vrot.lane.b32.xlu0 %v660, 127
      %v729 = vpop.permute.xlu0 %728
      %730 = vrot.lane.b32.xlu0 %v662, 127
      %v731 = vpop.permute.xlu0 %730
      %732 = vrot.lane.b32.xlu0 %v661, 127
      %v733 = vpop.permute.xlu0 %732
      %734 = vrot.lane.b32.xlu0 %v663, 127
      %v735 = vpop.permute.xlu0 %734
      %v736 = vsel %vm464, %v729, %v733
      %v737 = vsel %vm464, %v731, %v735
      %v738 = vsel %vm464, %v733, %v729
      %v739 = vsel %vm464, %v735, %v731
      %v740 = vmul.f32 %v736, %v467
      %v741 = vmul.f32 %v738, %v468
      %v742 = vmul.f32 %v737, %v467
      %v743 = vmul.f32 %v739, %v468
      %744 = vrot.lane.b32.xlu0 %v660, 113
      %v745 = vpop.permute.xlu0 %744
      %746 = vrot.lane.b32.xlu0 %v662, 113
      %v747 = vpop.permute.xlu0 %746
      %748 = vrot.lane.b32.xlu0 %v661, 113
      %v749 = vpop.permute.xlu0 %748
      %750 = vrot.lane.b32.xlu0 %v663, 113
      %v751 = vpop.permute.xlu0 %750
      %v752 = vsel %vm480, %v745, %v749
      %v753 = vsel %vm480, %v747, %v751
      %v754 = vsel %vm480, %v749, %v745
      %v755 = vsel %vm480, %v751, %v747
      %v756 = vmul.f32 %v752, %v483
      %v757 = vmul.f32 %v754, %v484
      %v758 = vmul.f32 %v753, %v483
      %v759 = vmul.f32 %v755, %v484
      %760 = vrot.lane.b32.xlu0 %v660, 112
      %v761 = vpop.permute.xlu0 %760
      %762 = vrot.lane.b32.xlu0 %v662, 112
      %v763 = vpop.permute.xlu0 %762
      %764 = vrot.lane.b32.xlu0 %v661, 112
      %v765 = vpop.permute.xlu0 %764
      %766 = vrot.lane.b32.xlu0 %v663, 112
      %v767 = vpop.permute.xlu0 %766
      %v768 = vsel %vm496, %v761, %v765
      %v769 = vsel %vm496, %v763, %v767
      %v770 = vsel %vm496, %v765, %v761
      %v771 = vsel %vm496, %v767, %v763
      %v772 = vmul.f32 %v768, %v499
      %v773 = vmul.f32 %v770, %v500
      %v774 = vmul.f32 %v769, %v499
      %v775 = vmul.f32 %v771, %v500
      %776 = vrot.lane.b32.xlu0 %v660, 111
      %v777 = vpop.permute.xlu0 %776
      %778 = vrot.lane.b32.xlu0 %v662, 111
      %v779 = vpop.permute.xlu0 %778
      %780 = vrot.lane.b32.xlu0 %v661, 111
      %v781 = vpop.permute.xlu0 %780
      %782 = vrot.lane.b32.xlu0 %v663, 111
      %v783 = vpop.permute.xlu0 %782
      %v784 = vsel %vm512, %v777, %v781
      %v785 = vsel %vm512, %v779, %v783
      %v786 = vsel %vm512, %v781, %v777
      %v787 = vsel %vm512, %v783, %v779
      %v788 = vmul.f32 %v784, %v515
      %v789 = vmul.f32 %v786, %v516
      %v790 = vmul.f32 %v785, %v515
      %v791 = vmul.f32 %v787, %v516
      %v796 = vrot.slane %v692, 4
      %v797 = vrot.slane %v693, 4
      %v798 = vrot.slane %v694, 4
      %v799 = vsel %vm548, %v796, %v798
      %v800 = vrot.slane %v695, 4
      %v801 = vsel %vm548, %v797, %v800
      %v810 = vrot.slane %v724, 4
      %v811 = vrot.slane %v725, 4
      %v812 = vrot.slane %v726, 4
      %v813 = vsel %vm548, %v810, %v812
      %v814 = vrot.slane %v727, 4
      %v815 = vsel %vm548, %v811, %v814
      %v824 = vrot.slane %v740, 4
      %v825 = vrot.slane %v741, 4
      %v826 = vrot.slane %v742, 4
      %v827 = vsel %vm548, %v824, %v826
      %v828 = vrot.slane %v743, 4
      %v829 = vsel %vm548, %v825, %v828
      %v838 = vrot.slane %v772, 4
      %v839 = vrot.slane %v773, 4
      %v840 = vrot.slane %v774, 4
      %v841 = vsel %vm548, %v838, %v840
      %v842 = vrot.slane %v775, 4
      %v843 = vsel %vm548, %v839, %v842
      %v848 = vsel %vm548, %v678, %v796
      %v849 = vsel %vm548, %v679, %v797
      %v850 = vsel %vm548, %v710, %v810
      %v851 = vsel %vm548, %v711, %v811
      %v852 = vsel %vm548, %v662, %v824
      %v853 = vsel %vm548, %v663, %v825
      %v854 = vsel %vm548, %v758, %v838
      %v855 = vsel %vm548, %v759, %v839
      %v856 = vld [vmem:[%s8] sm:$0xff]
      %v857 = vld [vmem:[%s9] sm:$0xff]
      %859 = vset.pattern.permute.xlu0 0
      %860 = vperm.xlu0 %859, %v857
      %v861 = vpop.permute.xlu0 %860
      %vm863 = vcmask 883712
      %v865 = vsel %vm863, %v856, 0
      %v868 = vsel %vm548, %v790, 0
      %v871 = vsel %vm548, %v791, 0
      %873 = vmatpush.msra.mxu0 0.0
      %874 = vmatpush.msra.mxu0 0.0
      %875 = vmatpush.msra.mxu0 %v868
      %876 = vmatpush.msra.mxu0 %v788
      %877 = vmatpush.msra.mxu0 %v841
      %878 = vmatpush.msra.mxu0 %v854
      %879 = vmatpush.msra.mxu0 %v756
      %880 = vmatpush.msra.mxu0 %v827
      %881 = vmatpush.msra.mxu0 %v852
      %882 = vmatpush.msra.mxu0 %v660
      %883 = vmatpush.msra.mxu0 %v813
      %884 = vmatpush.msra.mxu0 %v850
      %885 = vmatpush.msra.mxu0 %v708
      %886 = vmatpush.msra.mxu0 %v799
      %887 = vmatpush.msra.mxu0 %v848
      %888 = vmatpush.msra.mxu0 %v676
      %889 = vmatmul.f32.gmra.mxu0 %v865
      %v890 = vpop.f32.mrf.mxu0
      %v891 = vadd.f32 %v861, %v890
      %892 = vdwg.mxu0
      %893 = vmatpush.msra.mxu0 0.0
      %894 = vmatpush.msra.mxu0 0.0
      %895 = vmatpush.msra.mxu0 %v871
      %896 = vmatpush.msra.mxu0 %v789
      %897 = vmatpush.msra.mxu0 %v843
      %898 = vmatpush.msra.mxu0 %v855
      %899 = vmatpush.msra.mxu0 %v757
      %900 = vmatpush.msra.mxu0 %v829
      %901 = vmatpush.msra.mxu0 %v853
      %902 = vmatpush.msra.mxu0 %v661
      %903 = vmatpush.msra.mxu0 %v815
      %904 = vmatpush.msra.mxu0 %v851
      %905 = vmatpush.msra.mxu0 %v709
      %906 = vmatpush.msra.mxu0 %v801
      %907 = vmatpush.msra.mxu0 %v849
      %908 = vmatpush.msra.mxu0 %v677
      %909 = vmatmul.f32.gmra.mxu0 %v865
      %v910 = vpop.f32.mrf.mxu0
      %v911 = vadd.f32 %v861, %v910
      %912 = vdwg.mxu0
      %v915 = vrot.slane %v891, 4
      %v916 = vrot.slane %v911, 4
      %v919 = vsel %vm548, %v622, %v915
      %v920 = vsel %vm548, %v623, %v916
      %921 = vst [vmem:[%s359] sm:$0xff] %v626
      %922 = vst [vmem:[%s359 + $0x8] sm:$0xff] %v627
      %923 = vst [vmem:[%s359 + $0x10] sm:$0xff] %v919
      %924 = vst [vmem:[%s359 + $0x18] sm:$0xff] %v920
      %925 = vst [vmem:[%s359 + $0x20] sm:$0xf] %v915
      %926 = vst [vmem:[%s359 + $0x28] sm:$0xf] %v916
      %p927 = scmp.lt.s32.totalorder %s21, 1
      %s928 = scalar_select %p927, %s21, 1
      %s929 = smul.addr %s928, 6
      %s930 = smul.addr %s929, 8
      %s931 = scalar_lea.vmem %s10, %s930
      // Predicated region
      $region61: #{dense_block_forward.1} parent=59 // pred_check
        %p932 = pneg %p254
      $region62: #{dense_block_forward.1} parent=59 // pred_check_branch
        %934 = sbr.rel (%p932) target = $region64
      $region63: #{dense_block_forward.1} parent=59 // pred_region
        _
      $region64: #{dense_block_forward.1} parent=59 // pred_fallthru
        _
    $region60: #{dense_block_forward.1} parent=5 // pred_fallthru
      _
    %p935 = scmp.le.s32.totalorder 2, %s16
    // Predicated region
    $region65: #{dense_block_forward.1} parent=5 // pred_check
      %p936 = pneg %p935
    $region66: #{dense_block_forward.1} parent=5 // pred_check_branch
      %938 = sbr.rel (%p936) target = $region68
    $region67: #{dense_block_forward.1} parent=5 // pred_region
      %s939 = ssub.s32 %s16, 2
      // Predicated region
      $region69: #{dense_block_forward.1} parent=67 // pred_check
        %p940 = pneg %p260
      $region70: #{dense_block_forward.1} parent=67 // pred_check_branch
        %942 = sbr.rel (%p940) target = $region72
      $region71: #{dense_block_forward.1} parent=67 // pred_region
        %p943 = scmp.lt.s32.totalorder %s22, 1
        %s944 = scalar_select %p943, %s22, 1
        %s945 = smul.addr %s944, 6
        %s946 = smul.addr %s945, 8
        %s947 = scalar_lea.vmem %s10, %s946
      $region72: #{dense_block_forward.1} parent=67 // pred_fallthru
        _
    $region68: #{dense_block_forward.1} parent=5 // pred_fallthru
      _
  $region6: #{dense_block_forward.1} parent=0 // loop_footer
    %s20 = sadd.s32 1, %s16
  $region7: #{dense_block_forward.1} parent=0 // loop_footer_branch
    %15 = sbr.rel target = $region3
  $region8: #{dense_block_forward.1} parent=0 // loop_exit
    _

</llo_original>
